<compile_context>
chip_gen: v6e
topology: v6e:2x2x1
jax: 0.10.0
libtpu: 0.0.40
codegen_flags: <defaults>
</compile_context>

<pallas_src>
import functools
import math

import jax
import jax.numpy as jnp
from jax.experimental import pallas as pl
from jax.experimental.pallas import tpu as pltpu

_LANE = 128
_IS_TPU = jax.default_backend() == "tpu"
_DEV_KIND = jax.devices()[0].device_kind.lower() if _IS_TPU else ""
_APPROX_RECIP = _IS_TPU                              # EUP vrcp (TPU-only lowering)
_BF16_EXP = _IS_TPU and ("v5" not in _DEV_KIND)      # bf16 EUP only on v6e / v7x


# ----------------------------- in-kernel helpers -----------------------------

def _layer_norm(x, g, b, eps):
    mu = jnp.mean(x, axis=-1, keepdims=True)
    xc = x - mu
    var = jnp.mean(xc * xc, axis=-1, keepdims=True)
    return xc * jax.lax.rsqrt(var + eps) * g + b


def _gelu(x):
    # TODO(synk): reference BERT uses the exact erf-based GELU; tanh approximation used
    # here (erf has no guaranteed Mosaic lowering).
    c = math.sqrt(2.0 / math.pi)
    return 0.5 * x * (1.0 + jnp.tanh(c * (x + 0.044715 * x * x * x)))


def _apply_dropout(x, seed, p):
    """In-kernel dropout using the hardware PRNG (TPU only)."""
    pltpu.prng_seed(seed + pl.program_id(0))
    bits = pltpu.prng_random_bits(x.shape)
    if bits.dtype != jnp.int32:
        bits = pltpu.bitcast(bits, jnp.int32)
    u = (bits & jnp.int32(0x7FFFFF)).astype(jnp.float32) * (1.0 / (1 << 23))
    keep = (u >= p).astype(x.dtype)
    return x * keep * (1.0 / (1.0 - p))


def _pick_tile(n, cap):
    """Largest divisor of n that is <= cap and a multiple of 8 (else n itself)."""
    if n <= cap:
        return n
    t = (cap // 8) * 8
    while t >= 8:
        if n % t == 0:
            return t
        t -= 8
    return n


def _layer_vmem_limit(S, H, ffn_block, tq, num_heads):
    """Rough VMEM budget for the encoder-layer kernel, clamped to physical VMEM."""
    bf, f = 2, 4
    dH = H // num_heads
    weights = (H * H + H * 2 * H + H * H) * bf + (H * ffn_block + ffn_block * H) * bf
    acts = (tq * H + S * H) * bf + S * f
    out_blk = tq * H * bf
    scratch = 2 * num_heads * S * dH * bf + 2 * tq * H * f
    interm = (num_heads * tq * S * (f + bf)          # scores f32 + p bf16
              + num_heads * tq * H * f               # per-head output of Wo matmul
              + tq * ffn_block * (f + bf))           # FFN activation
    est = 2 * (weights + acts + out_blk) + scratch + interm + (8 << 20)
    try:
        cap = pltpu.get_tpu_info().vmem_capacity_bytes - (8 << 20)
    except Exception:
        cap = 56 << 20                               # conservative (v7x physical 64 MiB)
    return int(max(32 << 20, min(est, cap)))


# ------------------------------- Pallas kernels -------------------------------

def layernorm_kernel(x_ref, g_ref, b_ref, o_ref, *, eps):
    o_ref[0] = _layer_norm(x_ref[0], g_ref[...], b_ref[...], eps).astype(o_ref.dtype)


def bert_layer_kernel(xq_ref, xf_ref, bias_ref,
                      wq_ref, bq_ref, wkv_ref, bkv_ref, wo_ref, bo_ref,
                      ln1g_ref, ln1b_ref,
                      w1_ref, b1_ref, w2_ref, b2_ref, ln2g_ref, ln2b_ref,
                      o_ref,
                      kh_s, vh_s, h1_s, acc_s,
                      *, num_heads, ln_eps):
    f32, bf16 = jnp.float32, jnp.bfloat16
    q_idx = pl.program_id(1)
    ib = pl.program_id(2)
    n_ib = pl.num_programs(2)
    tq, H = xq_ref.shape[1], xq_ref.shape[2]
    S = xf_ref.shape[1]
    nh = num_heads
    dH = H // nh
    scale = 1.0 / math.sqrt(dH)

    # ---- K/V projection: once per batch row (cached in VMEM across q tiles) ----
    @pl.when(jnp.logical_and(q_idx == 0, ib == 0))
    def _():
        hf = xf_ref[0]                                               # (S, H) bf16
        kv = jnp.dot(hf, wkv_ref[...], preferred_element_type=f32) + bkv_ref[...]
        k = kv[:, :H]
        v = kv[:, H:]
        kh_s[...] = jnp.swapaxes(k.reshape(S, nh, dH), 0, 1).astype(bf16)
        vh_s[...] = jnp.swapaxes(v.reshape(S, nh, dH), 0, 1).astype(bf16)

    # ---- attention + LN1: once per query tile (first FFN block step) ----
    @pl.when(ib == 0)
    def _():
        hq = xq_ref[0]                                               # (tq, H) bf16
        q = jnp.dot(hq, wq_ref[...], preferred_element_type=f32) + bq_ref[...]
        qh = jnp.swapaxes(q.reshape(tq, nh, dH), 0, 1).astype(bf16)  # (nh, tq, dH)

        scores = jax.lax.dot_general(qh, kh_s[...], (((2,), (2,)), ((0,), (0,))),
                                     preferred_element_type=f32) * scale   # (nh, tq, S)
        scores = scores + bias_ref[0][None]
        scores = scores - jnp.max(scores, axis=-1, keepdims=True)
        if _BF16_EXP:
            p = jnp.exp(scores.astype(bf16))
            l = jnp.sum(p, axis=-1, keepdims=True, dtype=f32)
        else:
            pf = jnp.exp(scores)
            l = jnp.sum(pf, axis=-1, keepdims=True)
            p = pf.astype(bf16)

        ctx = jax.lax.dot_general(p, vh_s[...], (((2,), (1,)), ((0,), (0,))),
                                  preferred_element_type=f32)        # (nh, tq, dH)
        ctx = ctx * pl.reciprocal(l, approx=_APPROX_RECIP)           # softmax denom

        # head-merge folded into Wo (nh, dH, H): batched matmul + sum over heads.
        per_head = jax.lax.dot_general(ctx.astype(bf16), wo_ref[...],
                                       (((2,), (1,)), ((0,), (0,))),
                                       preferred_element_type=f32)   # (nh, tq, H)
        attn_out = jnp.sum(per_head, axis=0) + bo_ref[...]
        h1_s[...] = _layer_norm(attn_out + hq.astype(f32),
                                ln1g_ref[...], ln1b_ref[...], ln_eps)
        acc_s[...] = jnp.zeros_like(acc_s)

    # ---- FFN: one streamed intermediate block per grid step ----
    a = _gelu(jnp.dot(h1_s[...].astype(bf16), w1_ref[...],
                      preferred_element_type=f32) + b1_ref[...])
    acc_s[...] += jnp.dot(a.astype(bf16), w2_ref[...], preferred_element_type=f32)

    @pl.when(ib == n_ib - 1)
    def _():
        o_ref[0] = _layer_norm(acc_s[...] + b2_ref[...] + h1_s[...],
                               ln2g_ref[...], ln2b_ref[...], ln_eps).astype(o_ref.dtype)


def classifier_kernel(seed_ref, x_ref, w_ref, b_ref, o_ref, *, dropout_p):
    x = x_ref[...]
    if dropout_p > 0.0:
        x = _apply_dropout(x.astype(jnp.float32), seed_ref[0], dropout_p)
    o_ref[...] = jnp.dot(x.astype(jnp.bfloat16), w_ref[...],
                         preferred_element_type=jnp.float32) + b_ref[...]


def classifier_ce_kernel(seed_ref, x_ref, labels_ref, w_ref, b_ref, o_ref, acc_ref,
                         *, num_labels, n_total, dropout_p):
    i = pl.program_id(0)
    x = x_ref[...]
    if dropout_p > 0.0:
        x = _apply_dropout(x.astype(jnp.float32), seed_ref[0], dropout_p)
    logits = jnp.dot(x.astype(jnp.bfloat16), w_ref[...],
                     preferred_element_type=jnp.float32) + b_ref[...]     # (TN, Lp)
    labels = labels_ref[...]                                              # (TN, 1)
    TN, Lp = logits.shape
    cols = jax.lax.broadcasted_iota(jnp.int32, (TN, Lp), 1)
    valid = cols < num_labels
    z = jnp.where(valid, logits, -1e30)
    m = jnp.max(z, axis=-1, keepdims=True)
    p = jnp.where(valid, jnp.exp(z - m), 0.0)
    lse = m + jnp.log(jnp.sum(p, axis=-1, keepdims=True))                 # (TN, 1)
    onehot = (cols == labels).astype(jnp.float32)
    picked = jnp.sum(logits * onehot, axis=-1, keepdims=True)             # (TN, 1)
    tile_sum = jnp.sum(lse - picked, keepdims=True)                       # (1, 1)

    @pl.when(i == 0)
    def _():
        acc_ref[...] = jnp.zeros_like(acc_ref)

    acc_ref[...] += tile_sum

    @pl.when(i == pl.num_programs(0) - 1)
    def _():
        o_ref[...] = acc_ref[...] * (1.0 / n_total)


# ------------------------------- Pallas wrappers ------------------------------

def embed_layernorm(x, g, b, *, eps):
    B, S, H = x.shape
    ts = _pick_tile(S, 256)
    return pl.pallas_call(
        functools.partial(layernorm_kernel, eps=eps),
        grid=(B, S // ts),
        in_specs=[pl.BlockSpec((1, ts, H), lambda i, j: (i, j, 0)),
                  pl.BlockSpec((1, H), lambda i, j: (0, 0)),
                  pl.BlockSpec((1, H), lambda i, j: (0, 0))],
        out_specs=pl.BlockSpec((1, ts, H), lambda i, j: (i, j, 0)),
        out_shape=jax.ShapeDtypeStruct((B, S, H), jnp.bfloat16),
        compiler_params=pltpu.CompilerParams(
            dimension_semantics=("parallel", "parallel")),
    )(x, g, b)


def bert_layer(x, attn_bias, layer_params, *, num_heads, eps, tq):
    B, S, H = x.shape
    (wq, bq, wkv, bkv, wo, bo, ln1g, ln1b,
     w1, b1, w2, b2, ln2g, ln2b) = layer_params
    I = w1.shape[1]
    ffn_block = _pick_tile(I, 512)
    nq, n_ib = S // tq, I // ffn_block
    dH = H // num_heads

    def const_spec(p):
        nd = p.ndim
        return pl.BlockSpec(p.shape, lambda b, q, i, _nd=nd: (0,) * _nd)

    in_specs = [
        pl.BlockSpec((1, tq, H), lambda b, q, i: (b, q, 0)),   # query tile (bf16)
        pl.BlockSpec((1, S, H), lambda b, q, i: (b, 0, 0)),    # full seq for K/V (bf16)
        pl.BlockSpec((1, 1, S), lambda b, q, i: (b, 0, 0)),    # additive attention bias
        const_spec(wq), const_spec(bq),
        const_spec(wkv), const_spec(bkv),
        const_spec(wo), const_spec(bo),
        const_spec(ln1g), const_spec(ln1b),
        pl.BlockSpec((H, ffn_block), lambda b, q, i: (0, i)),  # W1 block (streamed)
        pl.BlockSpec((1, ffn_block), lambda b, q, i: (0, i)),  # b1 block
        pl.BlockSpec((ffn_block, H), lambda b, q, i: (i, 0)),  # W2 block (streamed)
        const_spec(b2), const_spec(ln2g), const_spec(ln2b),
    ]

    return pl.pallas_call(
        functools.partial(bert_layer_kernel, num_heads=num_heads, ln_eps=eps),
        grid=(B, nq, n_ib),
        in_specs=in_specs,
        out_specs=pl.BlockSpec((1, tq, H), lambda b, q, i: (b, q, 0)),
        out_shape=jax.ShapeDtypeStruct((B, S, H), jnp.bfloat16),
        scratch_shapes=[
            pltpu.VMEM((num_heads, S, dH), jnp.bfloat16),   # cached K heads (per batch)
            pltpu.VMEM((num_heads, S, dH), jnp.bfloat16),   # cached V heads (per batch)
            pltpu.VMEM((tq, H), jnp.float32),               # post-attention LN output
            pltpu.VMEM((tq, H), jnp.float32),               # FFN accumulator
        ],
        compiler_params=pltpu.CompilerParams(
            dimension_semantics=("parallel", "arbitrary", "arbitrary"),
            vmem_limit_bytes=_layer_vmem_limit(S, H, ffn_block, tq, num_heads)),
    )(x, x, attn_bias, wq, bq, wkv, bkv, wo, bo, ln1g, ln1b,
      w1, b1, w2, b2, ln2g, ln2b)


def _pad_classifier(w, b):
    L = w.shape[1]
    Lp = pl.cdiv(L, _LANE) * _LANE
    return jnp.pad(w, ((0, 0), (0, Lp - L))), jnp.pad(b, ((0, 0), (0, Lp - L))), Lp


def classifier_logits(x2d, w, b, seed, *, dropout_p):
    """Returns lane-padded logits (N, Lp) f32 (Lp multiple of 128)."""
    N, H = x2d.shape
    w_pad, b_pad, Lp = _pad_classifier(w, b)
    TN = _pick_tile(N, 256)
    return pl.pallas_call(
        functools.partial(classifier_kernel, dropout_p=dropout_p),
        grid=(N // TN,),
        in_specs=[pl.BlockSpec(memory_space=pltpu.MemorySpace.SMEM),
                  pl.BlockSpec((TN, H), lambda i: (i, 0)),
                  pl.BlockSpec((H, Lp), lambda i: (0, 0)),
                  pl.BlockSpec((1, Lp), lambda i: (0, 0))],
        out_specs=pl.BlockSpec((TN, Lp), lambda i: (i, 0)),
        out_shape=jax.ShapeDtypeStruct((N, Lp), jnp.float32),
        compiler_params=pltpu.CompilerParams(dimension_semantics=("parallel",)),
    )(seed, x2d, w_pad, b_pad)


def classifier_ce_loss(x2d, labels2d, w, b, seed, *, num_labels, dropout_p):
    """Fused dropout + classifier + mean cross-entropy (logits never hit HBM)."""
    N, H = x2d.shape
    w_pad, b_pad, Lp = _pad_classifier(w, b)
    TN = _pick_tile(N, 256)
    out = pl.pallas_call(
        functools.partial(classifier_ce_kernel, num_labels=num_labels,
                          n_total=N, dropout_p=dropout_p),
        grid=(N // TN,),
        in_specs=[pl.BlockSpec(memory_space=pltpu.MemorySpace.SMEM),
                  pl.BlockSpec((TN, H), lambda i: (i, 0)),
                  pl.BlockSpec((TN, 1), lambda i: (i, 0)),
                  pl.BlockSpec((H, Lp), lambda i: (0, 0)),
                  pl.BlockSpec((1, Lp), lambda i: (0, 0))],
        out_specs=pl.BlockSpec((1, 1), lambda i: (0, 0)),
        out_shape=jax.ShapeDtypeStruct((1, 1), jnp.float32),
        scratch_shapes=[pltpu.VMEM((1, 1), jnp.float32)],
        compiler_params=pltpu.CompilerParams(dimension_semantics=("arbitrary",)),
    )(seed, x2d, labels2d, w_pad, b_pad)
    return out[0, 0]


# --------------------------------- model glue ---------------------------------

def init_params(key, *, vocab, type_vocab, max_pos, H, I, num_layers, num_labels,
                num_heads):
    keys = iter(jax.random.split(key, 8 + 8 * num_layers))
    bf = jnp.bfloat16
    dH = H // num_heads

    def nrm(shape, dtype=jnp.float32, s=0.02):
        return (jax.random.normal(next(keys), shape, jnp.float32) * s).astype(dtype)

    params = dict(
        word_emb=nrm((vocab, H)),
        pos_emb=nrm((max_pos, H)),
        type_emb=nrm((type_vocab, H)),
        emb_ln_g=jnp.ones((1, H), jnp.float32),
        emb_ln_b=jnp.zeros((1, H), jnp.float32),
        cls_w=nrm((H, num_labels), bf),
        cls_b=jnp.zeros((1, num_labels), jnp.float32),
        num_labels=num_labels,
        layers=[],
    )
    for _ in range(num_layers):
        wq = nrm((H, H), bf)
        wkv = nrm((H, 2 * H), bf)                            # fused K/V weight
        wo = nrm((H, H), bf).reshape(num_heads, dH, H)       # head-major output proj
        layer = (
            wq, jnp.zeros((1, H), jnp.float32),              # Wq, bq
            wkv, jnp.zeros((1, 2 * H), jnp.float32),         # Wkv, bkv
            wo, jnp.zeros((1, H), jnp.float32),              # Wo (nh,dH,H), bo
            jnp.ones((1, H), jnp.float32), jnp.zeros((1, H), jnp.float32),   # LN1
            nrm((H, I), bf), jnp.zeros((1, I), jnp.float32), # FFN up
            nrm((I, H), bf), jnp.zeros((1, H), jnp.float32), # FFN down
            jnp.ones((1, H), jnp.float32), jnp.zeros((1, H), jnp.float32),   # LN2
        )
        params["layers"].append(layer)
    return params


def kobert_forward(params, input_ids, token_type_ids, attn_masks, labels=None,
                   *, num_heads, dropout_p, eps, train=False, dropout_key=None):
    B, S = input_ids.shape
    H = params["word_emb"].shape[1]
    L = params["num_labels"]

    # Embedding lookups (glue): word + position + token-type, then LayerNorm kernel.
    pos_ids = jnp.arange(S)
    emb = (params["word_emb"][input_ids]
           + params["pos_emb"][pos_ids][None, :, :]
           + params["type_emb"][token_type_ids])
    h = embed_layernorm(emb, params["emb_ln_g"], params["emb_ln_b"], eps=eps)  # bf16
    # TODO(synk): BERT-internal dropouts (embedding/attention/hidden) use eval-mode
    # (identity) semantics; only the explicit Kobert classifier dropout is modelled.

    attn_bias = (1.0 - attn_masks.astype(jnp.float32))[:, None, :] * -10000.0  # (B,1,S)

    tq = _pick_tile(S, 256)
    for layer_params in params["layers"]:
        h = bert_layer(h, attn_bias, layer_params, num_heads=num_heads, eps=eps, tq=tq)

    x2d = h.reshape(B * S, H)                                 # bf16 activations

    eff_p = dropout_p if (train and dropout_p > 0.0) else 0.0
    if dropout_key is None:
        dropout_key = jax.random.PRNGKey(0)
    seed = jax.random.randint(dropout_key, (1,), 0, 2 ** 31 - 1, dtype=jnp.int32)

    if eff_p > 0.0 and not _IS_TPU:
        # TODO(synk): in-kernel pltpu.prng_* has no CPU/interpret lowering; host fallback.
        keep = jax.random.bernoulli(dropout_key, 1.0 - eff_p, x2d.shape)
        x2d = (x2d.astype(jnp.float32) * keep / (1.0 - eff_p)).astype(jnp.bfloat16)
        eff_p = 0.0

    if labels is not None:
        return classifier_ce_loss(x2d, labels.reshape(-1, 1).astype(jnp.int32),
                                  params["cls_w"], params["cls_b"], seed,
                                  num_labels=L, dropout_p=eff_p)

    logits_pad = classifier_logits(x2d, params["cls_w"], params["cls_b"], seed,
                                   dropout_p=eff_p)
    return logits_pad[:, :L].reshape(B, S, L)


# ------------------------------------ main ------------------------------------

if __name__ == "__main__":
    B, S = 2, 8                      # batch, sequence length
    H, NUM_HEADS, INTER = 32, 2, 64  # hidden size, heads, FFN intermediate
    NUM_LAYERS = 2
    VOCAB, TYPE_VOCAB, MAX_POS = 64, 2, 16
    NUM_LABELS = 3
    DROPOUT_P, LN_EPS = 0.1, 1e-12

    key = jax.random.PRNGKey(0)
    pkey, ikey, lkey, dkey = jax.random.split(key, 4)

    params = init_params(pkey, vocab=VOCAB, type_vocab=TYPE_VOCAB, max_pos=MAX_POS,
                         H=H, I=INTER, num_layers=NUM_LAYERS, num_labels=NUM_LABELS,
                         num_heads=NUM_HEADS)

    input_ids = jax.random.randint(ikey, (B, S), 0, VOCAB, dtype=jnp.int32)
    token_type_ids = jnp.zeros((B, S), jnp.int32)
    attn_masks = jnp.array([[1, 1, 1, 1, 1, 1, 1, 1],
                            [1, 1, 1, 1, 1, 1, 0, 0]], jnp.int32)
    labels = jax.random.randint(lkey, (B, S), 0, NUM_LABELS, dtype=jnp.int32)

    # labels=None path -> logits (B, S, num_labels); eval mode => deterministic.
    logits = kobert_forward(params, input_ids, token_type_ids, attn_masks,
                            num_heads=NUM_HEADS, dropout_p=DROPOUT_P, eps=LN_EPS,
                            train=False)
    # labels path -> scalar cross-entropy loss; train mode => classifier dropout active.
    loss = kobert_forward(params, input_ids, token_type_ids, attn_masks, labels,
                          num_heads=NUM_HEADS, dropout_p=DROPOUT_P, eps=LN_EPS,
                          train=True, dropout_key=dkey)

    jax.block_until_ready((logits, loss))
    assert logits.shape == (B, S, NUM_LABELS)
    assert loss.shape == ()
    assert bool(jnp.isfinite(loss))
    print("KERNEL_OK")
</pallas_src>

<mosaic_0001>
module attributes {stable_mosaic.version = 11 : i64} {
  func.func @layernorm_kernel(%arg0: i32, %arg1: i32, %arg2: memref<1x8x32xf32, #tpu.memory_space<vmem>>, %arg3: memref<1x32xf32, #tpu.memory_space<vmem>>, %arg4: memref<1x32xf32, #tpu.memory_space<vmem>>, %arg5: memref<1x8x32xbf16, #tpu.memory_space<vmem>>) attributes {dimension_semantics = [#tpu.dimension_semantics<parallel>, #tpu.dimension_semantics<parallel>], iteration_bounds = array<i64: 2, 1>, scalar_prefetch = 0 : i64, scratch_operands = 0 : i64, tpu.core_type = #tpu.core_type<tc>, window_params = [{transform_indices = @transform_0, window_bounds = array<i64: 1, 8, 32>}, {pipeline_mode = #tpu.pipeline_mode<synchronous>, transform_indices = @transform_1, window_bounds = array<i64: 1, 32>}, {pipeline_mode = #tpu.pipeline_mode<synchronous>, transform_indices = @transform_2, window_bounds = array<i64: 1, 32>}, {transform_indices = @transform_3, window_bounds = array<i64: 1, 8, 32>}]} {
    %c0 = arith.constant 0 : index
    %c0_0 = arith.constant 0 : index
    %c0_1 = arith.constant 0 : index
    %0 = vector.load %arg2[%c0, %c0_0, %c0_1] : memref<1x8x32xf32, #tpu.memory_space<vmem>>, vector<1x8x32xf32>
    %1 = vector.shape_cast %0 : vector<1x8x32xf32> to vector<8x32xf32>
    %c0_2 = arith.constant 0 : index
    %c0_3 = arith.constant 0 : index
    %2 = vector.load %arg3[%c0_2, %c0_3] : memref<1x32xf32, #tpu.memory_space<vmem>>, vector<1x32xf32>
    %c0_4 = arith.constant 0 : index
    %c0_5 = arith.constant 0 : index
    %3 = vector.load %arg4[%c0_4, %c0_5] : memref<1x32xf32, #tpu.memory_space<vmem>>, vector<1x32xf32>
    %cst = arith.constant dense<0.000000e+00> : vector<8xf32>
    %4 = vector.multi_reduction <add>, %1, %cst [1] : vector<8x32xf32> to vector<8xf32>
    %5 = vector.shape_cast %4 : vector<8xf32> to vector<8x1xf32>
    %cst_6 = arith.constant 3.200000e+01 : f32
    %6 = vector.broadcast %cst_6 : f32 to vector<8x1xf32>
    %7 = arith.divf %5, %6 : vector<8x1xf32>
    %8 = vector.broadcast %7 : vector<8x1xf32> to vector<8x32xf32>
    %9 = arith.subf %1, %8 : vector<8x32xf32>
    %10 = arith.mulf %9, %9 : vector<8x32xf32>
    %cst_7 = arith.constant dense<0.000000e+00> : vector<8xf32>
    %11 = vector.multi_reduction <add>, %10, %cst_7 [1] : vector<8x32xf32> to vector<8xf32>
    %12 = vector.shape_cast %11 : vector<8xf32> to vector<8x1xf32>
    %cst_8 = arith.constant 3.200000e+01 : f32
    %13 = vector.broadcast %cst_8 : f32 to vector<8x1xf32>
    %14 = arith.divf %12, %13 : vector<8x1xf32>
    %cst_9 = arith.constant 9.99999996E-13 : f32
    %15 = vector.broadcast %cst_9 : f32 to vector<8x1xf32>
    %16 = arith.addf %14, %15 : vector<8x1xf32>
    %17 = math.rsqrt %16 : vector<8x1xf32>
    %18 = vector.broadcast %17 : vector<8x1xf32> to vector<8x32xf32>
    %19 = arith.mulf %9, %18 : vector<8x32xf32>
    %20 = vector.broadcast %2 : vector<1x32xf32> to vector<8x32xf32>
    %21 = arith.mulf %19, %20 : vector<8x32xf32>
    %22 = vector.broadcast %3 : vector<1x32xf32> to vector<8x32xf32>
    %23 = arith.addf %21, %22 : vector<8x32xf32>
    %24 = arith.truncf %23 : vector<8x32xf32> to vector<8x32xbf16>
    %c0_10 = arith.constant 0 : index
    %c0_11 = arith.constant 0 : index
    %c0_12 = arith.constant 0 : index
    %25 = vector.load %arg5[%c0_10, %c0_11, %c0_12] : memref<1x8x32xbf16, #tpu.memory_space<vmem>>, vector<1x8x32xbf16>
    %26 = vector.shape_cast %25 : vector<1x8x32xbf16> to vector<8x32xbf16>
    %27 = vector.shape_cast %24 : vector<8x32xbf16> to vector<1x8x32xbf16>
    tpu.vector_store %arg5[%c0_10, %c0_11, %c0_12], %27 {strides = array<i32>} : memref<1x8x32xbf16, #tpu.memory_space<vmem>>, vector<1x8x32xbf16>,
    return
  }
  func.func @transform_0(%arg0: i32, %arg1: i32) -> (i32, i32, i32) {
    %c0_i32 = arith.constant 0 : i32
    %c0_i32_0 = arith.constant 0 : i32
    return %arg0, %arg1, %c0_i32 : i32, i32, i32
  }
  func.func @transform_1(%arg0: i32, %arg1: i32) -> (i32, i32) {
    %c0_i32 = arith.constant 0 : i32
    %c0_i32_0 = arith.constant 0 : i32
    %c0_i32_1 = arith.constant 0 : i32
    return %c0_i32, %c0_i32_0 : i32, i32
  }
  func.func @transform_2(%arg0: i32, %arg1: i32) -> (i32, i32) {
    %c0_i32 = arith.constant 0 : i32
    %c0_i32_0 = arith.constant 0 : i32
    %c0_i32_1 = arith.constant 0 : i32
    return %c0_i32, %c0_i32_0 : i32, i32
  }
  func.func @transform_3(%arg0: i32, %arg1: i32) -> (i32, i32, i32) {
    %c0_i32 = arith.constant 0 : i32
    %c0_i32_0 = arith.constant 0 : i32
    return %arg0, %arg1, %c0_i32 : i32, i32, i32
  }
}

</mosaic_0001>

<llo_original>
// kernel: tpu_custom_call.1
$region0: #{tpu_custom_call.1}
  #allocation0 [shape = 'u32[]', space=smem, size = 0x4, offset = 0x4, fixed_abs, tag = 'smem constant byte address 0x4 - core index']
  #allocation1 [shape = 'u32[144,128]{1,0:T(1,128)}', space=vmem, size = 0x12000, scoped, tag = 'internal scratch']
  %s0 = inlined_call_operand.hbm [shape: f32[2,8,32], index: 0, kind: input, shape index: {}]
  %s1 = inlined_call_operand.vmem [shape: f32[1,32], index: 1, kind: input, shape index: {}]
  %s2 = inlined_call_operand.vmem [shape: f32[1,32], index: 2, kind: input, shape index: {}]
  %s3 = inlined_call_operand.hbm [shape: bf16[2,8,32], index: 3, kind: output, shape index: {}]
  %s4 = sld [smem:[#allocation0]]
  $region49: #{tpu_custom_call.1} parent=0
    _
  %s6 = ssub.s32 1, %s4
  %s7 = scalar_select 0, %s6, %s4
  $region1: #{tpu_custom_call.1} parent=0
    #allocation2 [shape = 'u8[8192]{0}', space=vmem, size = 0x2000, scoped, tag = 'input window, operand 0']
    #allocation3 [shape = 's32[2]{0}', space=sflag, size = 0x8, scoped, tag = 'scoped memory for tpu_custom_call.1']
    #allocation4 [shape = 's32[2]{0}', space=sflag, size = 0x8, scoped, tag = 'scoped memory for tpu_custom_call.1']
    #allocation5 [shape = 'u8[4096]{0}', space=vmem, size = 0x1000, scoped, tag = 'output window, operand 0']
    %8 = vsyncpa [#allocation3], 0
    %s9 = scalar_lea.sflag [#allocation3], 1
    %10 = vsyncpa %s9, 0
    %11 = vsyncpa [#allocation4], 0
    %s12 = scalar_lea.sflag [#allocation4], 1
    %13 = vsyncpa %s12, 0
    loop: start=0, step=1, limit=4
    $region2: #{tpu_custom_call.1} parent=1 // loop_pre_header
      _
    $region3: #{tpu_custom_call.1} parent=1 // loop_header
      %s15 = sphi 0, %s19
      %p16 = scmp.ge.s32.totalorder %s15, 4
      %s22 = sphi 0, %s34
      %s23 = sphi 0, %s30
      %s24 = sphi 0, %s22
      %s25 = sphi 0, %s23
      %s26 = sphi 0, %s24
      %s27 = sphi 0, %s25
      %s39 = sphi 0, %s41
      %s42 = sphi 0, %s39
      %s43 = sphi 0, %s42
      %s59 = sphi 0, %s43
      %s63 = sphi 0, %s63
      %s65 = sphi 0, %s63
      %s66 = sphi 0, %s65
      %s80 = sphi 0, %s66
      %s84 = sphi 0, %s84
      %s86 = sphi 0, %s84
      %s87 = sphi 0, %s86
      %s101 = sphi 0, %s87
      %s109 = sphi 0, %s111
      %s112 = sphi 0, %s109
      %s113 = sphi 0, %s112
      %s129 = sphi 0, %s113
    $region4: #{tpu_custom_call.1} parent=1 // loop_header_branch
      %18 = sbr.rel (%p16) target = $region8
    $region5: #{tpu_custom_call.1} parent=1 // loop_body
      %s20 = ssub.s32 %s15, 1
      %s21 = ssub.s32 %s15, 2
      %s28 = sadd.s32 1, %s23
      %p29 = scmp.ge.s32.totalorder %s28, 1
      %s30 = scalar_select %p29, 0, %s28
      %s31 = sadd.s32 1, %s22
      %s32 = scalar_select %p29, %s31, %s22
      %p33 = scmp.ge.s32.totalorder %s32, 2
      %s34 = scalar_select %p33, 0, %s32
      %s35 = ssub.s32 %s22, %s34
      %s36 = ssub.s32 %s23, %s30
      %s37 = sor.u32 %s35, %s36
      %p38 = scmp.eq.s32.totalorder %s37, 0
      %s40 = sadd.s32 %s39, 1
      %s41 = scalar_select %p38, %s39, %s40
      %p44 = pneg %p38
      %p45 = scmp.eq.s32.totalorder %s15, 1
      %p46 = por %p44, %p45
      %p47 = scmp.ne.s32.totalorder %s39, %s42
      %p48 = scmp.eq.s32.totalorder %s15, 0
      %p49 = por %p47, %p48
      %p50 = scmp.ne.s32.totalorder %s39, %s42
      %p51 = scmp.eq.s32.totalorder %s20, 1
      %p52 = por %p50, %p51
      %p53 = scmp.ne.s32.totalorder %s42, %s43
      %p54 = scmp.eq.s32.totalorder %s20, 0
      %p55 = por %p53, %p54
      %p56 = scmp.ne.s32.totalorder %s42, %s43
      %p57 = scmp.eq.s32.totalorder %s21, 1
      %p58 = por %p56, %p57
      %p60 = scmp.ne.s32.totalorder %s43, %s59
      %p61 = scmp.eq.s32.totalorder %s21, 0
      %p62 = por %p60, %p61
      %s64 = sadd.s32 %s63, 1
      %p67 = scmp.eq.s32.totalorder %s15, 1
      %p68 = scmp.ne.s32.totalorder %s63, %s65
      %p69 = scmp.eq.s32.totalorder %s15, 0
      %p70 = por %p68, %p69
      %p71 = scmp.ne.s32.totalorder %s63, %s65
      %p72 = scmp.eq.s32.totalorder %s20, 1
      %p73 = por %p71, %p72
      %p74 = scmp.ne.s32.totalorder %s65, %s66
      %p75 = scmp.eq.s32.totalorder %s20, 0
      %p76 = por %p74, %p75
      %p77 = scmp.ne.s32.totalorder %s65, %s66
      %p78 = scmp.eq.s32.totalorder %s21, 1
      %p79 = por %p77, %p78
      %p81 = scmp.ne.s32.totalorder %s66, %s80
      %p82 = scmp.eq.s32.totalorder %s21, 0
      %p83 = por %p81, %p82
      %s85 = sadd.s32 %s84, 1
      %p88 = scmp.eq.s32.totalorder %s15, 1
      %p89 = scmp.ne.s32.totalorder %s84, %s86
      %p90 = scmp.eq.s32.totalorder %s15, 0
      %p91 = por %p89, %p90
      %p92 = scmp.ne.s32.totalorder %s84, %s86
      %p93 = scmp.eq.s32.totalorder %s20, 1
      %p94 = por %p92, %p93
      %p95 = scmp.ne.s32.totalorder %s86, %s87
      %p96 = scmp.eq.s32.totalorder %s20, 0
      %p97 = por %p95, %p96
      %p98 = scmp.ne.s32.totalorder %s86, %s87
      %p99 = scmp.eq.s32.totalorder %s21, 1
      %p100 = por %p98, %p99
      %p102 = scmp.ne.s32.totalorder %s87, %s101
      %p103 = scmp.eq.s32.totalorder %s21, 0
      %p104 = por %p102, %p103
      %s105 = ssub.s32 %s22, %s34
      %s106 = ssub.s32 %s23, %s30
      %s107 = sor.u32 %s105, %s106
      %p108 = scmp.eq.s32.totalorder %s107, 0
      %s110 = sadd.s32 %s109, 1
      %s111 = scalar_select %p108, %s109, %s110
      %p114 = pneg %p108
      %p115 = scmp.eq.s32.totalorder %s15, 1
      %p116 = por %p114, %p115
      %p117 = scmp.ne.s32.totalorder %s109, %s112
      %p118 = scmp.eq.s32.totalorder %s15, 0
      %p119 = por %p117, %p118
      %p120 = scmp.ne.s32.totalorder %s109, %s112
      %p121 = scmp.eq.s32.totalorder %s20, 1
      %p122 = por %p120, %p121
      %p123 = scmp.ne.s32.totalorder %s112, %s113
      %p124 = scmp.eq.s32.totalorder %s20, 0
      %p125 = por %p123, %p124
      %p126 = scmp.ne.s32.totalorder %s112, %s113
      %p127 = scmp.eq.s32.totalorder %s21, 1
      %p128 = por %p126, %p127
      %p130 = scmp.ne.s32.totalorder %s113, %s129
      %p131 = scmp.eq.s32.totalorder %s21, 0
      %p132 = por %p130, %p131
      %p133 = scmp.le.s32.totalorder 1, %s15
      %p134 = scmp.lt.s32.totalorder %s15, 3
      %p135 = pnand %p133, %p134
      %p136 = pneg %p135
      // Predicated region
      $region9: #{tpu_custom_call.1} parent=5 // pred_check
        _
      $region10: #{tpu_custom_call.1} parent=5 // pred_check_branch
        %138 = sbr.rel (%p135) target = $region12
      $region11: #{tpu_custom_call.1} parent=5 // pred_region
        %s139 = ssub.s32 %s15, 1
        // Predicated region
        $region13: #{tpu_custom_call.1} parent=11 // pred_check
          %p140 = pneg %p76
        $region14: #{tpu_custom_call.1} parent=11 // pred_check_branch
          %142 = sbr.rel (%p140) target = $region16
        $region15: #{tpu_custom_call.1} parent=11 // pred_region
          _
        $region16: #{tpu_custom_call.1} parent=11 // pred_fallthru
          _
        // Predicated region
        $region17: #{tpu_custom_call.1} parent=11 // pred_check
          %p143 = pneg %p97
        $region18: #{tpu_custom_call.1} parent=11 // pred_check_branch
          %145 = sbr.rel (%p143) target = $region20
        $region19: #{tpu_custom_call.1} parent=11 // pred_region
          _
        $region20: #{tpu_custom_call.1} parent=11 // pred_fallthru
          _
      $region12: #{tpu_custom_call.1} parent=5 // pred_fallthru
        _
      %p146 = scmp.lt.s32.totalorder %s15, 2
      // Predicated region
      $region21: #{tpu_custom_call.1} parent=5 // pred_check
        %p147 = pneg %p146
      $region22: #{tpu_custom_call.1} parent=5 // pred_check_branch
        %149 = sbr.rel (%p147) target = $region24
      $region23: #{tpu_custom_call.1} parent=5 // pred_region
        // Predicated region
        $region25: #{tpu_custom_call.1} parent=23 // pred_check
          %p150 = pneg %p49
        $region26: #{tpu_custom_call.1} parent=23 // pred_check_branch
          %152 = sbr.rel (%p150) target = $region28
        $region27: #{tpu_custom_call.1} parent=23 // pred_region
          %s153 = sand.u32 %s39, 1
          %s154 = scalar_lea.sflag [#allocation3], %s153
          %s155 = sand.u32 %s39, 1
          %s156 = smul.addr %s155, 8
          %s157 = scalar_lea.vmem [#allocation2], %s156
          %s159 = ssub.s32 128, 128
          %160 = vsyncadd %s154, %s159
          %s161 = sadd.s32 %s23, %s22
          %s162 = smul.addr %s161, 128
          %s163 = scalar_lea.hbm %s0, %s162
          %s165 = sshll.u32 %s157, 4
          %s166 = int_to_ptr.vmem [resolvable:$true] %s165
          %168 = dma.hbm_to_vmem [thread:$0]  %s163, 128, %s166, %s154
        $region28: #{tpu_custom_call.1} parent=23 // pred_fallthru
          _
      $region24: #{tpu_custom_call.1} parent=5 // pred_fallthru
        _
      %p169 = scmp.le.s32.totalorder 1, %s15
      %p170 = scmp.lt.s32.totalorder %s15, 3
      %p171 = pnand %p169, %p170
      %p172 = pneg %p171
      // Predicated region
      $region29: #{tpu_custom_call.1} parent=5 // pred_check
        _
      $region30: #{tpu_custom_call.1} parent=5 // pred_check_branch
        %174 = sbr.rel (%p171) target = $region32
      $region31: #{tpu_custom_call.1} parent=5 // pred_region
        %s175 = ssub.s32 %s15, 1
        %s176 = sand.u32 %s42, 1
        %s177 = scalar_lea.sflag [#allocation3], %s176
        %s178 = sand.u32 %s42, 1
        %s179 = smul.addr %s178, 8
        %s180 = scalar_lea.vmem [#allocation2], %s179
        // Predicated region
        $region33: #{tpu_custom_call.1} parent=31 // pred_check
          %p181 = pneg %p55
        $region34: #{tpu_custom_call.1} parent=31 // pred_check_branch
          %183 = sbr.rel (%p181) target = $region36
        $region35: #{tpu_custom_call.1} parent=31 // pred_region
          %184 = dma.done %s177, 128
        $region36: #{tpu_custom_call.1} parent=31 // pred_fallthru
          _
        %s185 = sand.u32 %s42, 1
        %s186 = scalar_lea.sflag [#allocation3], %s185
        %s187 = sand.u32 %s42, 1
        %s188 = smul.addr %s187, 8
        %s189 = scalar_lea.vmem [#allocation2], %s188
        %p190 = pneg %p55
        %p191 = pneg %p52
        %p192 = pneg %p76
        %p193 = pneg %p73
        %p194 = pneg %p97
        %p195 = pneg %p94
        %p196 = pneg %p125
        %p197 = pneg %p122
        %s198 = sand.u32 %s112, 1
        %s199 = scalar_lea.sflag [#allocation4], %s198
        %s200 = sand.u32 %s112, 1
        %s201 = smul.addr %s200, 4
        %s202 = scalar_lea.vmem [#allocation5], %s201
        %v203 = vld [vmem:[%s180] sm:$0xff]
        %v204 = vld [vmem:[%s1] sm:$0x1]
        %v205 = vld [vmem:[%s2] sm:$0x1]
        %vm206 = vcmask 261120
        %v207 = vsel %vm206, %v203, 0.0
        %208 = vadd.xlane.f32.xlu0 %v207
        %v209 = vpop.xlane.xlu0 %208
        %v210 = vrcp.pop 32.0
        %v211 = vmul.f32 %v209, %v210
        %v212 = vsub.f32 %v203, %v211
        %v213 = vmul.f32 %v212, %v212
        %v214 = vsel %vm206, %v213, 0.0
        %215 = vadd.xlane.f32.xlu0 %v214
        %v216 = vpop.xlane.xlu0 %215
        %v217 = vmul.f32 %v216, %v210
        %v218 = vadd.f32 %v217, 1e-12
        %v219 = vrsqrt.pop %v218
        %v220 = vmul.f32 %v212, %v219
        %v222 = vlaneseq
        %v223 = vshrl.u32 %v222, 7
        %v224 = vsub.s32 0, %v223
        %v225 = vrot.slane %v204, %v224
        %v227 = vmul.f32 %v220, %v225
        %v229 = vlaneseq
        %v230 = vshrl.u32 %v229, 7
        %v231 = vsub.s32 0, %v230
        %v232 = vrot.slane %v205, %v231
        %v234 = vadd.f32 %v227, %v232
        %v235 = vpack.c.bf16 %v234, %v234
        %vm236 = vcmask 257024
        %237 = vst.msk [vmem:[%s202] sm:$0xf] %vm236, %v235
        %s238 = sand.u32 %s112, 1
        %s239 = scalar_lea.sflag [#allocation4], %s238
        %s240 = sand.u32 %s112, 1
        %s241 = smul.addr %s240, 4
        %s242 = scalar_lea.vmem [#allocation5], %s241
        // Predicated region
        $region37: #{tpu_custom_call.1} parent=31 // pred_check
          %p243 = pneg %p122
        $region38: #{tpu_custom_call.1} parent=31 // pred_check_branch
          %245 = sbr.rel (%p243) target = $region40
        $region39: #{tpu_custom_call.1} parent=31 // pred_region
          %s247 = ssub.s32 64, 64
          %248 = vsyncadd %s239, %s247
          %s249 = sadd.s32 %s25, %s24
          %s250 = smul.addr %s249, 64
          %s251 = scalar_lea.hbm %s3, %s250
          %s253 = sshll.u32 %s242, 4
          %s254 = int_to_ptr.vmem [resolvable:$true] %s253
          %256 = dma.vmem_to_hbm [thread:$0]  %s254, 64, %s251, %s239
        $region40: #{tpu_custom_call.1} parent=31 // pred_fallthru
          _
      $region32: #{tpu_custom_call.1} parent=5 // pred_fallthru
        _
      %p257 = scmp.le.s32.totalorder 2, %s15
      // Predicated region
      $region41: #{tpu_custom_call.1} parent=5 // pred_check
        %p258 = pneg %p257
      $region42: #{tpu_custom_call.1} parent=5 // pred_check_branch
        %260 = sbr.rel (%p258) target = $region44
      $region43: #{tpu_custom_call.1} parent=5 // pred_region
        %s261 = ssub.s32 %s15, 2
        // Predicated region
        $region45: #{tpu_custom_call.1} parent=43 // pred_check
          %p262 = pneg %p128
        $region46: #{tpu_custom_call.1} parent=43 // pred_check_branch
          %264 = sbr.rel (%p262) target = $region48
        $region47: #{tpu_custom_call.1} parent=43 // pred_region
          %s265 = sand.u32 %s113, 1
          %s266 = scalar_lea.sflag [#allocation4], %s265
          %s267 = sand.u32 %s113, 1
          %s268 = smul.addr %s267, 4
          %s269 = scalar_lea.vmem [#allocation5], %s268
          %270 = dma.done %s266, 64
        $region48: #{tpu_custom_call.1} parent=43 // pred_fallthru
          _
      $region44: #{tpu_custom_call.1} parent=5 // pred_fallthru
        _
    $region6: #{tpu_custom_call.1} parent=1 // loop_footer
      %s19 = sadd.s32 1, %s15
    $region7: #{tpu_custom_call.1} parent=1 // loop_footer_branch
      %14 = sbr.rel target = $region3
    $region8: #{tpu_custom_call.1} parent=1 // loop_exit
      _
    %271 = vsyncpa [#allocation3], 1
    %s272 = scalar_lea.sflag [#allocation3], 1
    %273 = vsyncpa %s272, 1
    %274 = vsyncpa [#allocation4], 1
    %s275 = scalar_lea.sflag [#allocation4], 1
    %276 = vsyncpa %s275, 1

</llo_original>
